<compile_context>
chip_gen: v5e
topology: v5e:2x2
jax: 0.10.0
libtpu: 0.0.40
codegen_flags: <defaults>
</compile_context>

<pallas_src>
import jax
import jax.numpy as jnp
from jax.experimental import pallas as pl
from jax.experimental.pallas import tpu as pltpu


def channel_attention_kernel(x_ref, w1_ref, w2_ref, o_ref, pooled_ref):
    # x_ref / o_ref block: (TB, C, HW); w1: (Cr, C); w2: (C, Cr)
    # pooled_ref scratch : (C, 2*TB)  -- avg columns [0, TB), max columns [TB, 2*TB)
    tb = x_ref.shape[0]

    # ---- Pass 1: per-image avg/max pooling over HW (f32 accumulation) -------
    # Static Python loop: tb is a compile-time constant, every slice is static,
    # and each iteration's (C, HW) load is consumed by its own reductions.
    for b in range(tb):
        xb = x_ref[b].astype(jnp.float32)                       # (C, HW)
        pooled_ref[:, b:b + 1] = jnp.mean(xb, axis=1, keepdims=True)      # (C, 1)
        pooled_ref[:, tb + b:tb + b + 1] = jnp.max(xb, axis=1, keepdims=True)

    # ---- Shared MLP applied to all 2*TB pooled vectors at once --------------
    w1 = w1_ref[...]                                            # (Cr, C) f32
    w2 = w2_ref[...]                                            # (C, Cr) f32
    pooled = pooled_ref[...]                                    # (C, 2*TB)
    h = jnp.maximum(
        jnp.dot(w1, pooled, preferred_element_type=jnp.float32), 0.0)     # (Cr, 2*TB)
    fc = jnp.dot(w2, h, preferred_element_type=jnp.float32)               # (C, 2*TB)
    gate = jax.nn.sigmoid(fc[:, :tb] + fc[:, tb:])                         # (C, TB)

    # ---- Pass 2: chunk-wise gated multiply (re-reads x from VMEM) -----------
    for b in range(tb):
        g = gate[:, b:b + 1]                                    # (C, 1)
        xb = x_ref[b].astype(jnp.float32)                       # (C, HW)
        o_ref[b] = (xb * g).astype(o_ref.dtype)


def _pick_batch_tile(batch, bytes_per_image, target_bytes=2 << 20):
    """Largest divisor of `batch` whose x tile is <= target_bytes, while keeping
    at least 2 grid steps when batch >= 2 (so v7x's two TensorCores both work).
    The resulting double-buffered in+out footprint (4 * tile) stays <= 8 MiB,
    well under the default scoped VMEM on v5e/v6e/v7x."""
    cap = max(1, target_bytes // max(1, int(bytes_per_image)))
    if batch >= 2:
        cap = min(cap, batch // 2)
    tb = 1
    for d in range(1, batch + 1):
        if batch % d == 0 and d <= cap:
            tb = d
    return tb


def channel_attention(x_nchw, w1, w2):
    """x_nchw: (B, C, H, W); w1: (C//r, C); w2: (C, C//r) (1x1-conv weights)."""
    B, C, H, W = x_nchw.shape
    HW = H * W
    Cr = w1.shape[0]

    x = x_nchw.reshape(B, C, HW)
    # Pre-cast once here instead of per grid step inside the kernel.
    w1 = w1.astype(jnp.float32)
    w2 = w2.astype(jnp.float32)

    tb = _pick_batch_tile(B, C * HW * x.dtype.itemsize)
    grid = (B // tb,)

    out = pl.pallas_call(
        channel_attention_kernel,
        out_shape=jax.ShapeDtypeStruct((B, C, HW), x.dtype),
        grid=grid,
        in_specs=[
            pl.BlockSpec((tb, C, HW), lambda b: (b, 0, 0)),
            pl.BlockSpec((Cr, C), lambda b: (0, 0)),   # resident, never re-fetched
            pl.BlockSpec((C, Cr), lambda b: (0, 0)),   # resident, never re-fetched
        ],
        out_specs=pl.BlockSpec((tb, C, HW), lambda b: (b, 0, 0)),
        scratch_shapes=[pltpu.VMEM((C, 2 * tb), jnp.float32)],
        compiler_params=pltpu.CompilerParams(
            dimension_semantics=("parallel",)),
    )(x, w1, w2)
    return out.reshape(B, C, H, W)


def channel_attention_ref(x, w1, w2):
    # Pure-JAX reference mirroring the PyTorch forward.
    avg = jnp.mean(x, axis=(2, 3), keepdims=True)          # (B,C,1,1)
    mx = jnp.max(x, axis=(2, 3), keepdims=True)            # (B,C,1,1)

    def fc(p):
        p = p[:, :, 0, 0]                                   # (B,C)
        h = jnp.maximum(p @ w1.T, 0.0)                      # (B,Cr)
        o = h @ w2.T                                        # (B,C)
        return o[:, :, None, None]

    out = fc(avg) + fc(mx)
    return jax.nn.sigmoid(out) * x


if __name__ == "__main__":
    key = jax.random.PRNGKey(0)
    B, C, H, W = 4, 64, 16, 16
    reduction = 16
    Cr = C // reduction

    kx, k1, k2 = jax.random.split(key, 3)
    x = jax.random.normal(kx, (B, C, H, W), dtype=jnp.float32)
    # Conv2d(C, C//r, 1, bias=False) weight (Cr, C, 1, 1) -> squeezed to (Cr, C)
    w1 = jax.random.normal(k1, (Cr, C), dtype=jnp.float32) * (1.0 / (C ** 0.5))
    # Conv2d(C//r, C, 1, bias=False) weight (C, Cr, 1, 1) -> squeezed to (C, Cr)
    w2 = jax.random.normal(k2, (C, Cr), dtype=jnp.float32) * (1.0 / (Cr ** 0.5))

    out = jax.block_until_ready(channel_attention(x, w1, w2))

    ref = channel_attention_ref(x, w1, w2)
    assert out.shape == (B, C, H, W)
    assert jnp.allclose(out, ref, atol=1e-5, rtol=1e-5), "mismatch vs reference"

    print("KERNEL_OK")
</pallas_src>

<mosaic_0001>
module attributes {stable_mosaic.version = 11 : i64} {
  func.func @channel_attention_kernel(%arg0: i32, %arg1: memref<2x64x256xf32, #tpu.memory_space<vmem>>, %arg2: memref<4x64xf32, #tpu.memory_space<vmem>>, %arg3: memref<64x4xf32, #tpu.memory_space<vmem>>, %arg4: memref<2x64x256xf32, #tpu.memory_space<vmem>>, %arg5: memref<64x4xf32, #tpu.memory_space<vmem>>) attributes {dimension_semantics = [#tpu.dimension_semantics<parallel>], iteration_bounds = array<i64: 2>, scalar_prefetch = 0 : i64, scratch_operands = 1 : i64, tpu.core_type = #tpu.core_type<tc>, window_params = [{transform_indices = @transform_0, window_bounds = array<i64: 2, 64, 256>}, {pipeline_mode = #tpu.pipeline_mode<synchronous>, transform_indices = @transform_1, window_bounds = array<i64: 4, 64>}, {pipeline_mode = #tpu.pipeline_mode<synchronous>, transform_indices = @transform_2, window_bounds = array<i64: 64, 4>}, {transform_indices = @transform_3, window_bounds = array<i64: 2, 64, 256>}]} {
    %c0 = arith.constant 0 : index
    %c0_0 = arith.constant 0 : index
    %c0_1 = arith.constant 0 : index
    %0 = vector.load %arg1[%c0, %c0_0, %c0_1] : memref<2x64x256xf32, #tpu.memory_space<vmem>>, vector<1x64x256xf32>
    %1 = vector.shape_cast %0 : vector<1x64x256xf32> to vector<64x256xf32>
    %cst = arith.constant dense<0.000000e+00> : vector<64xf32>
    %2 = vector.multi_reduction <add>, %1, %cst [1] : vector<64x256xf32> to vector<64xf32>
    %3 = vector.shape_cast %2 : vector<64xf32> to vector<64x1xf32>
    %cst_2 = arith.constant 2.560000e+02 : f32
    %4 = vector.broadcast %cst_2 : f32 to vector<64x1xf32>
    %5 = arith.divf %3, %4 : vector<64x1xf32>
    %c0_3 = arith.constant 0 : index
    %c0_4 = arith.constant 0 : index
    %6 = vector.load %arg5[%c0_3, %c0_4] : memref<64x4xf32, #tpu.memory_space<vmem>>, vector<64x1xf32>
    tpu.vector_store %arg5[%c0_3, %c0_4], %5 {strides = array<i32>} : memref<64x4xf32, #tpu.memory_space<vmem>>, vector<64x1xf32>,
    %cst_5 = arith.constant dense<0xFF800000> : vector<64xf32>
    %7 = vector.multi_reduction <maximumf>, %1, %cst_5 [1] : vector<64x256xf32> to vector<64xf32>
    %8 = vector.shape_cast %7 : vector<64xf32> to vector<64x1xf32>
    %c0_6 = arith.constant 0 : index
    %c2 = arith.constant 2 : index
    %9 = vector.load %arg5[%c0_6, %c2] : memref<64x4xf32, #tpu.memory_space<vmem>>, vector<64x1xf32>
    tpu.vector_store %arg5[%c0_6, %c2], %8 {strides = array<i32>} : memref<64x4xf32, #tpu.memory_space<vmem>>, vector<64x1xf32>,
    %c1 = arith.constant 1 : index
    %c0_7 = arith.constant 0 : index
    %c0_8 = arith.constant 0 : index
    %10 = vector.load %arg1[%c1, %c0_7, %c0_8] : memref<2x64x256xf32, #tpu.memory_space<vmem>>, vector<1x64x256xf32>
    %11 = vector.shape_cast %10 : vector<1x64x256xf32> to vector<64x256xf32>
    %cst_9 = arith.constant dense<0.000000e+00> : vector<64xf32>
    %12 = vector.multi_reduction <add>, %11, %cst_9 [1] : vector<64x256xf32> to vector<64xf32>
    %13 = vector.shape_cast %12 : vector<64xf32> to vector<64x1xf32>
    %cst_10 = arith.constant 2.560000e+02 : f32
    %14 = vector.broadcast %cst_10 : f32 to vector<64x1xf32>
    %15 = arith.divf %13, %14 : vector<64x1xf32>
    %c0_11 = arith.constant 0 : index
    %c1_12 = arith.constant 1 : index
    %16 = vector.load %arg5[%c0_11, %c1_12] : memref<64x4xf32, #tpu.memory_space<vmem>>, vector<64x1xf32>
    tpu.vector_store %arg5[%c0_11, %c1_12], %15 {strides = array<i32>} : memref<64x4xf32, #tpu.memory_space<vmem>>, vector<64x1xf32>,
    %cst_13 = arith.constant dense<0xFF800000> : vector<64xf32>
    %17 = vector.multi_reduction <maximumf>, %11, %cst_13 [1] : vector<64x256xf32> to vector<64xf32>
    %18 = vector.shape_cast %17 : vector<64xf32> to vector<64x1xf32>
    %c0_14 = arith.constant 0 : index
    %c3 = arith.constant 3 : index
    %19 = vector.load %arg5[%c0_14, %c3] : memref<64x4xf32, #tpu.memory_space<vmem>>, vector<64x1xf32>
    tpu.vector_store %arg5[%c0_14, %c3], %18 {strides = array<i32>} : memref<64x4xf32, #tpu.memory_space<vmem>>, vector<64x1xf32>,
    %c0_15 = arith.constant 0 : index
    %c0_16 = arith.constant 0 : index
    %20 = vector.load %arg2[%c0_15, %c0_16] : memref<4x64xf32, #tpu.memory_space<vmem>>, vector<4x64xf32>
    %c0_17 = arith.constant 0 : index
    %c0_18 = arith.constant 0 : index
    %21 = vector.load %arg3[%c0_17, %c0_18] : memref<64x4xf32, #tpu.memory_space<vmem>>, vector<64x4xf32>
    %c0_19 = arith.constant 0 : index
    %c0_20 = arith.constant 0 : index
    %22 = vector.load %arg5[%c0_19, %c0_20] : memref<64x4xf32, #tpu.memory_space<vmem>>, vector<64x4xf32>
    %cst_21 = arith.constant dense<0.000000e+00> : vector<4x4xf32>
    %23 = tpu.matmul %20, %22, %cst_21 {dimension_numbers = #tpu.dot_dimension_numbers<[1], [0], [0], [1], [0, 0, 1, 1], [], []>} : vector<4x64xf32>, vector<64x4xf32>, vector<4x4xf32> -> vector<4x4xf32>
    %cst_22 = arith.constant 0.000000e+00 : f32
    %24 = vector.broadcast %cst_22 : f32 to vector<4x4xf32>
    %25 = arith.maximumf %23, %24 : vector<4x4xf32>
    %cst_23 = arith.constant dense<0.000000e+00> : vector<64x4xf32>
    %26 = tpu.matmul %21, %25, %cst_23 {dimension_numbers = #tpu.dot_dimension_numbers<[1], [0], [0], [1], [0, 0, 1, 1], [], []>} : vector<64x4xf32>, vector<4x4xf32>, vector<64x4xf32> -> vector<64x4xf32>
    %27 = vector.extract_strided_slice %26 {offsets = [0, 0], sizes = [64, 2], strides = [1, 1]} : vector<64x4xf32> to vector<64x2xf32>
    %28 = vector.extract_strided_slice %26 {offsets = [0, 2], sizes = [64, 2], strides = [1, 1]} : vector<64x4xf32> to vector<64x2xf32>
    %29 = arith.addf %27, %28 : vector<64x2xf32>
    %30 = arith.negf %29 : vector<64x2xf32>
    %31 = math.exp %30 : vector<64x2xf32>
    %cst_24 = arith.constant 1.000000e+00 : f32
    %32 = vector.broadcast %cst_24 : f32 to vector<64x2xf32>
    %33 = arith.addf %32, %31 : vector<64x2xf32>
    %34 = arith.divf %32, %33 : vector<64x2xf32>
    %35 = vector.extract_strided_slice %34 {offsets = [0, 0], sizes = [64, 1], strides = [1, 1]} : vector<64x2xf32> to vector<64x1xf32>
    %c0_25 = arith.constant 0 : index
    %c0_26 = arith.constant 0 : index
    %c0_27 = arith.constant 0 : index
    %36 = vector.load %arg1[%c0_25, %c0_26, %c0_27] : memref<2x64x256xf32, #tpu.memory_space<vmem>>, vector<1x64x256xf32>
    %37 = vector.shape_cast %36 : vector<1x64x256xf32> to vector<64x256xf32>
    %38 = vector.broadcast %35 : vector<64x1xf32> to vector<64x256xf32>
    %39 = arith.mulf %37, %38 : vector<64x256xf32>
    %c0_28 = arith.constant 0 : index
    %c0_29 = arith.constant 0 : index
    %c0_30 = arith.constant 0 : index
    %40 = vector.load %arg4[%c0_28, %c0_29, %c0_30] : memref<2x64x256xf32, #tpu.memory_space<vmem>>, vector<1x64x256xf32>
    %41 = vector.shape_cast %40 : vector<1x64x256xf32> to vector<64x256xf32>
    %42 = vector.shape_cast %39 : vector<64x256xf32> to vector<1x64x256xf32>
    tpu.vector_store %arg4[%c0_28, %c0_29, %c0_30], %42 {strides = array<i32>} : memref<2x64x256xf32, #tpu.memory_space<vmem>>, vector<1x64x256xf32>,
    %43 = vector.extract_strided_slice %34 {offsets = [0, 1], sizes = [64, 1], strides = [1, 1]} : vector<64x2xf32> to vector<64x1xf32>
    %c1_31 = arith.constant 1 : index
    %c0_32 = arith.constant 0 : index
    %c0_33 = arith.constant 0 : index
    %44 = vector.load %arg1[%c1_31, %c0_32, %c0_33] : memref<2x64x256xf32, #tpu.memory_space<vmem>>, vector<1x64x256xf32>
    %45 = vector.shape_cast %44 : vector<1x64x256xf32> to vector<64x256xf32>
    %46 = vector.broadcast %43 : vector<64x1xf32> to vector<64x256xf32>
    %47 = arith.mulf %45, %46 : vector<64x256xf32>
    %c1_34 = arith.constant 1 : index
    %c0_35 = arith.constant 0 : index
    %c0_36 = arith.constant 0 : index
    %48 = vector.load %arg4[%c1_34, %c0_35, %c0_36] : memref<2x64x256xf32, #tpu.memory_space<vmem>>, vector<1x64x256xf32>
    %49 = vector.shape_cast %48 : vector<1x64x256xf32> to vector<64x256xf32>
    %50 = vector.shape_cast %47 : vector<64x256xf32> to vector<1x64x256xf32>
    tpu.vector_store %arg4[%c1_34, %c0_35, %c0_36], %50 {strides = array<i32>} : memref<2x64x256xf32, #tpu.memory_space<vmem>>, vector<1x64x256xf32>,
    return
  }
  func.func @transform_0(%arg0: i32) -> (i32, i32, i32) {
    %c0_i32 = arith.constant 0 : i32
    %c0_i32_0 = arith.constant 0 : i32
    %c0_i32_1 = arith.constant 0 : i32
    return %arg0, %c0_i32, %c0_i32_0 : i32, i32, i32
  }
  func.func @transform_1(%arg0: i32) -> (i32, i32) {
    %c0_i32 = arith.constant 0 : i32
    %c0_i32_0 = arith.constant 0 : i32
    %c0_i32_1 = arith.constant 0 : i32
    return %c0_i32, %c0_i32_0 : i32, i32
  }
  func.func @transform_2(%arg0: i32) -> (i32, i32) {
    %c0_i32 = arith.constant 0 : i32
    %c0_i32_0 = arith.constant 0 : i32
    %c0_i32_1 = arith.constant 0 : i32
    return %c0_i32, %c0_i32_0 : i32, i32
  }
  func.func @transform_3(%arg0: i32) -> (i32, i32, i32) {
    %c0_i32 = arith.constant 0 : i32
    %c0_i32_0 = arith.constant 0 : i32
    %c0_i32_1 = arith.constant 0 : i32
    return %arg0, %c0_i32, %c0_i32_0 : i32, i32, i32
  }
}

</mosaic_0001>

<llo_original>
// kernel: tpu_custom_call.1
$region0: #{tpu_custom_call.1}
  #allocation0 [shape = 'u32[]', space=smem, size = 0x4, offset = 0x4, fixed_abs, tag = 'smem constant byte address 0x4 - core index']
  #allocation1 [shape = 'u32[72,128]{1,0:T(1,128)}', space=vmem, size = 0x9000, scoped, tag = 'internal scratch']
  #allocation2 [shape = 'f32[64,4]{1,0:T(8,128)}', space=vmem, size = 0x8000, scoped, tag = 'scratch operand']
  %s0 = inlined_call_operand.hbm [shape: f32[4,64,256], index: 0, kind: input, shape index: {}]
  %s1 = inlined_call_operand.vmem [shape: f32[4,64], index: 1, kind: input, shape index: {}]
  %s2 = inlined_call_operand.vmem [shape: f32[64,4], index: 2, kind: input, shape index: {}]
  %s3 = inlined_call_operand.hbm [shape: f32[4,64,256], index: 3, kind: output, shape index: {}]
  %s4 = sld [smem:[#allocation0]]
  $region49: #{tpu_custom_call.1} parent=0
    _
  %s6 = ssub.s32 1, %s4
  %s7 = scalar_select 0, %s6, %s4
  $region1: #{tpu_custom_call.1} parent=0
    #allocation3 [shape = 'u8[262144]{0}', space=vmem, size = 0x40000, scoped, tag = 'input window, operand 0']
    #allocation4 [shape = 's32[2]{0}', space=sflag, size = 0x8, scoped, tag = 'scoped memory for tpu_custom_call.1']
    #allocation5 [shape = 's32[2]{0}', space=sflag, size = 0x8, scoped, tag = 'scoped memory for tpu_custom_call.1']
    #allocation6 [shape = 'u8[262144]{0}', space=vmem, size = 0x40000, scoped, tag = 'output window, operand 0']
    %8 = vsyncpa [#allocation4], 0
    %s9 = scalar_lea.sflag [#allocation4], 1
    %10 = vsyncpa %s9, 0
    %11 = vsyncpa [#allocation5], 0
    %s12 = scalar_lea.sflag [#allocation5], 1
    %13 = vsyncpa %s12, 0
    loop: start=0, step=1, limit=4
    $region2: #{tpu_custom_call.1} parent=1 // loop_pre_header
      _
    $region3: #{tpu_custom_call.1} parent=1 // loop_header
      %s15 = sphi 0, %s19
      %p16 = scmp.ge.s32.totalorder %s15, 4
      %s25 = sphi 0, %s27
      %s28 = sphi 0, %s25
      %s29 = sphi 0, %s28
      %s45 = sphi 0, %s29
      %s49 = sphi 0, %s49
      %s51 = sphi 0, %s49
      %s52 = sphi 0, %s51
      %s66 = sphi 0, %s52
      %s70 = sphi 0, %s70
      %s72 = sphi 0, %s70
      %s73 = sphi 0, %s72
      %s87 = sphi 0, %s73
      %s93 = sphi 0, %s95
      %s96 = sphi 0, %s93
      %s97 = sphi 0, %s96
      %s113 = sphi 0, %s97
    $region4: #{tpu_custom_call.1} parent=1 // loop_header_branch
      %18 = sbr.rel (%p16) target = $region8
    $region5: #{tpu_custom_call.1} parent=1 // loop_body
      %s20 = ssub.s32 %s15, 1
      %s21 = ssub.s32 %s15, 2
      %s22 = sadd.s32 %s15, 1
      %s23 = ssub.s32 %s15, %s22
      %p24 = scmp.eq.s32.totalorder %s23, 0
      %s26 = sadd.s32 %s25, 1
      %s27 = scalar_select %p24, %s25, %s26
      %p30 = pneg %p24
      %p31 = scmp.eq.s32.totalorder %s15, 1
      %p32 = por %p30, %p31
      %p33 = scmp.ne.s32.totalorder %s25, %s28
      %p34 = scmp.eq.s32.totalorder %s15, 0
      %p35 = por %p33, %p34
      %p36 = scmp.ne.s32.totalorder %s25, %s28
      %p37 = scmp.eq.s32.totalorder %s20, 1
      %p38 = por %p36, %p37
      %p39 = scmp.ne.s32.totalorder %s28, %s29
      %p40 = scmp.eq.s32.totalorder %s20, 0
      %p41 = por %p39, %p40
      %p42 = scmp.ne.s32.totalorder %s28, %s29
      %p43 = scmp.eq.s32.totalorder %s21, 1
      %p44 = por %p42, %p43
      %p46 = scmp.ne.s32.totalorder %s29, %s45
      %p47 = scmp.eq.s32.totalorder %s21, 0
      %p48 = por %p46, %p47
      %s50 = sadd.s32 %s49, 1
      %p53 = scmp.eq.s32.totalorder %s15, 1
      %p54 = scmp.ne.s32.totalorder %s49, %s51
      %p55 = scmp.eq.s32.totalorder %s15, 0
      %p56 = por %p54, %p55
      %p57 = scmp.ne.s32.totalorder %s49, %s51
      %p58 = scmp.eq.s32.totalorder %s20, 1
      %p59 = por %p57, %p58
      %p60 = scmp.ne.s32.totalorder %s51, %s52
      %p61 = scmp.eq.s32.totalorder %s20, 0
      %p62 = por %p60, %p61
      %p63 = scmp.ne.s32.totalorder %s51, %s52
      %p64 = scmp.eq.s32.totalorder %s21, 1
      %p65 = por %p63, %p64
      %p67 = scmp.ne.s32.totalorder %s52, %s66
      %p68 = scmp.eq.s32.totalorder %s21, 0
      %p69 = por %p67, %p68
      %s71 = sadd.s32 %s70, 1
      %p74 = scmp.eq.s32.totalorder %s15, 1
      %p75 = scmp.ne.s32.totalorder %s70, %s72
      %p76 = scmp.eq.s32.totalorder %s15, 0
      %p77 = por %p75, %p76
      %p78 = scmp.ne.s32.totalorder %s70, %s72
      %p79 = scmp.eq.s32.totalorder %s20, 1
      %p80 = por %p78, %p79
      %p81 = scmp.ne.s32.totalorder %s72, %s73
      %p82 = scmp.eq.s32.totalorder %s20, 0
      %p83 = por %p81, %p82
      %p84 = scmp.ne.s32.totalorder %s72, %s73
      %p85 = scmp.eq.s32.totalorder %s21, 1
      %p86 = por %p84, %p85
      %p88 = scmp.ne.s32.totalorder %s73, %s87
      %p89 = scmp.eq.s32.totalorder %s21, 0
      %p90 = por %p88, %p89
      %s91 = ssub.s32 %s15, %s22
      %p92 = scmp.eq.s32.totalorder %s91, 0
      %s94 = sadd.s32 %s93, 1
      %s95 = scalar_select %p92, %s93, %s94
      %p98 = pneg %p92
      %p99 = scmp.eq.s32.totalorder %s15, 1
      %p100 = por %p98, %p99
      %p101 = scmp.ne.s32.totalorder %s93, %s96
      %p102 = scmp.eq.s32.totalorder %s15, 0
      %p103 = por %p101, %p102
      %p104 = scmp.ne.s32.totalorder %s93, %s96
      %p105 = scmp.eq.s32.totalorder %s20, 1
      %p106 = por %p104, %p105
      %p107 = scmp.ne.s32.totalorder %s96, %s97
      %p108 = scmp.eq.s32.totalorder %s20, 0
      %p109 = por %p107, %p108
      %p110 = scmp.ne.s32.totalorder %s96, %s97
      %p111 = scmp.eq.s32.totalorder %s21, 1
      %p112 = por %p110, %p111
      %p114 = scmp.ne.s32.totalorder %s97, %s113
      %p115 = scmp.eq.s32.totalorder %s21, 0
      %p116 = por %p114, %p115
      %p117 = scmp.le.s32.totalorder 1, %s15
      %p118 = scmp.lt.s32.totalorder %s15, 3
      %p119 = pnand %p117, %p118
      %p120 = pneg %p119
      // Predicated region
      $region9: #{tpu_custom_call.1} parent=5 // pred_check
        _
      $region10: #{tpu_custom_call.1} parent=5 // pred_check_branch
        %122 = sbr.rel (%p119) target = $region12
      $region11: #{tpu_custom_call.1} parent=5 // pred_region
        %s123 = ssub.s32 %s15, 1
        // Predicated region
        $region13: #{tpu_custom_call.1} parent=11 // pred_check
          %p124 = pneg %p62
        $region14: #{tpu_custom_call.1} parent=11 // pred_check_branch
          %126 = sbr.rel (%p124) target = $region16
        $region15: #{tpu_custom_call.1} parent=11 // pred_region
          _
        $region16: #{tpu_custom_call.1} parent=11 // pred_fallthru
          _
        // Predicated region
        $region17: #{tpu_custom_call.1} parent=11 // pred_check
          %p127 = pneg %p83
        $region18: #{tpu_custom_call.1} parent=11 // pred_check_branch
          %129 = sbr.rel (%p127) target = $region20
        $region19: #{tpu_custom_call.1} parent=11 // pred_region
          _
        $region20: #{tpu_custom_call.1} parent=11 // pred_fallthru
          _
      $region12: #{tpu_custom_call.1} parent=5 // pred_fallthru
        _
      %p130 = scmp.lt.s32.totalorder %s15, 2
      // Predicated region
      $region21: #{tpu_custom_call.1} parent=5 // pred_check
        %p131 = pneg %p130
      $region22: #{tpu_custom_call.1} parent=5 // pred_check_branch
        %133 = sbr.rel (%p131) target = $region24
      $region23: #{tpu_custom_call.1} parent=5 // pred_region
        // Predicated region
        $region25: #{tpu_custom_call.1} parent=23 // pred_check
          %p134 = pneg %p35
        $region26: #{tpu_custom_call.1} parent=23 // pred_check_branch
          %136 = sbr.rel (%p134) target = $region28
        $region27: #{tpu_custom_call.1} parent=23 // pred_region
          %s137 = sand.u32 %s25, 1
          %s138 = scalar_lea.sflag [#allocation4], %s137
          %s139 = sand.u32 %s25, 1
          %s140 = smul.addr %s139, 256
          %s141 = scalar_lea.vmem [#allocation3], %s140
          %s142 = smul.u32 2, %s15
          %144 = vsyncadd %s138, 0
          %s145 = smul.addr %s142, 16
          %s146 = smul.addr %s145, 8
          %s147 = scalar_lea.hbm %s0, %s146
          %s148 = sshll.u32 %s147, 4
          %s149 = int_to_ptr.hbm [resolvable:$true] %s148
          %s150 = sshll.u32 %s141, 4
          %s151 = int_to_ptr.vmem [resolvable:$true] %s150
          %156 = dma.hbm_to_vmem [thread:$0]  %s149, 4096, %s151, %s138, 256, 256, 16
        $region28: #{tpu_custom_call.1} parent=23 // pred_fallthru
          _
      $region24: #{tpu_custom_call.1} parent=5 // pred_fallthru
        _
      %p157 = scmp.le.s32.totalorder 1, %s15
      %p158 = scmp.lt.s32.totalorder %s15, 3
      %p159 = pnand %p157, %p158
      %p160 = pneg %p159
      // Predicated region
      $region29: #{tpu_custom_call.1} parent=5 // pred_check
        _
      $region30: #{tpu_custom_call.1} parent=5 // pred_check_branch
        %162 = sbr.rel (%p159) target = $region32
      $region31: #{tpu_custom_call.1} parent=5 // pred_region
        %s163 = ssub.s32 %s15, 1
        %s164 = sand.u32 %s28, 1
        %s165 = scalar_lea.sflag [#allocation4], %s164
        %s166 = sand.u32 %s28, 1
        %s167 = smul.addr %s166, 256
        %s168 = scalar_lea.vmem [#allocation3], %s167
        // Predicated region
        $region33: #{tpu_custom_call.1} parent=31 // pred_check
          %p169 = pneg %p41
        $region34: #{tpu_custom_call.1} parent=31 // pred_check_branch
          %171 = sbr.rel (%p169) target = $region36
        $region35: #{tpu_custom_call.1} parent=31 // pred_region
          %173 = dma.done %s165, 4096
        $region36: #{tpu_custom_call.1} parent=31 // pred_fallthru
          _
        %s174 = sand.u32 %s28, 1
        %s175 = scalar_lea.sflag [#allocation4], %s174
        %s176 = sand.u32 %s28, 1
        %s177 = smul.addr %s176, 256
        %s178 = scalar_lea.vmem [#allocation3], %s177
        %p179 = pneg %p41
        %p180 = pneg %p38
        %p181 = pneg %p62
        %p182 = pneg %p59
        %p183 = pneg %p83
        %p184 = pneg %p80
        %p185 = pneg %p109
        %p186 = pneg %p106
        %s187 = sand.u32 %s96, 1
        %s188 = scalar_lea.sflag [#allocation5], %s187
        %s189 = sand.u32 %s96, 1
        %s190 = smul.addr %s189, 256
        %s191 = scalar_lea.vmem [#allocation6], %s190
        %s192 = smul.u32 2, %s20
        %s193 = smul.u32 2, %s20
        %v194 = vld [vmem:[%s168] sm:$0xff]
        %v195 = vld [vmem:[%s168 + $0x8] sm:$0xff]
        %v196 = vld [vmem:[%s168 + $0x10] sm:$0xff]
        %v197 = vld [vmem:[%s168 + $0x18] sm:$0xff]
        %v198 = vld [vmem:[%s168 + $0x20] sm:$0xff]
        %v199 = vld [vmem:[%s168 + $0x28] sm:$0xff]
        %v200 = vld [vmem:[%s168 + $0x30] sm:$0xff]
        %v201 = vld [vmem:[%s168 + $0x38] sm:$0xff]
        %v202 = vld [vmem:[%s168 + $0x40] sm:$0xff]
        %v203 = vld [vmem:[%s168 + $0x48] sm:$0xff]
        %v204 = vld [vmem:[%s168 + $0x50] sm:$0xff]
        %v205 = vld [vmem:[%s168 + $0x58] sm:$0xff]
        %v206 = vld [vmem:[%s168 + $0x60] sm:$0xff]
        %v207 = vld [vmem:[%s168 + $0x68] sm:$0xff]
        %v208 = vld [vmem:[%s168 + $0x70] sm:$0xff]
        %v209 = vld [vmem:[%s168 + $0x78] sm:$0xff]
        %v210 = vadd.f32 %v194, %v195
        %211 = vadd.xlane.f32.xlu0 %v210
        %v212 = vpop.xlane.xlu0 %211
        %v213 = vadd.f32 %v196, %v197
        %214 = vadd.xlane.f32.xlu0 %v213
        %v215 = vpop.xlane.xlu0 %214
        %v216 = vadd.f32 %v198, %v199
        %217 = vadd.xlane.f32.xlu0 %v216
        %v218 = vpop.xlane.xlu0 %217
        %v219 = vadd.f32 %v200, %v201
        %220 = vadd.xlane.f32.xlu0 %v219
        %v221 = vpop.xlane.xlu0 %220
        %v222 = vadd.f32 %v202, %v203
        %223 = vadd.xlane.f32.xlu0 %v222
        %v224 = vpop.xlane.xlu0 %223
        %v225 = vadd.f32 %v204, %v205
        %226 = vadd.xlane.f32.xlu0 %v225
        %v227 = vpop.xlane.xlu0 %226
        %v228 = vadd.f32 %v206, %v207
        %229 = vadd.xlane.f32.xlu0 %v228
        %v230 = vpop.xlane.xlu0 %229
        %v231 = vadd.f32 %v208, %v209
        %232 = vadd.xlane.f32.xlu0 %v231
        %v233 = vpop.xlane.xlu0 %232
        %v234 = vrcp.pop 256.0
        %v235 = vmul.f32 256.0, %v234
        %v236 = vsub.f32 1.0, %v235
        %v237 = vmul.f32 %v234, %v236
        %v238 = vadd.f32 %v234, %v237
        %vm239 = vweird.f32 %v234
        %v240 = vsel %vm239, %v234, %v238
        %v241 = vmul.f32 %v212, %v240
        %v242 = vmul.f32 %v215, %v240
        %v243 = vmul.f32 %v218, %v240
        %v244 = vmul.f32 %v221, %v240
        %v245 = vmul.f32 %v224, %v240
        %v246 = vmul.f32 %v227, %v240
        %v247 = vmul.f32 %v230, %v240
        %v248 = vmul.f32 %v233, %v240
        %vm249 = vcmask 7168
        %250 = vst.msk [vmem:[#allocation2] sm:$0xff] %vm249, %v241
        %251 = vst.msk [vmem:[#allocation2 + $0x8] sm:$0xff] %vm249, %v242
        %252 = vst.msk [vmem:[#allocation2 + $0x10] sm:$0xff] %vm249, %v243
        %253 = vst.msk [vmem:[#allocation2 + $0x18] sm:$0xff] %vm249, %v244
        %254 = vst.msk [vmem:[#allocation2 + $0x20] sm:$0xff] %vm249, %v245
        %255 = vst.msk [vmem:[#allocation2 + $0x28] sm:$0xff] %vm249, %v246
        %256 = vst.msk [vmem:[#allocation2 + $0x30] sm:$0xff] %vm249, %v247
        %257 = vst.msk [vmem:[#allocation2 + $0x38] sm:$0xff] %vm249, %v248
        %v258 = vmax.f32 %v194, %v195
        %259 = vmax.xlane.f32.xlu0 %v258
        %v260 = vpop.xlane.xlu0 %259
        %v261 = vmax.f32 %v196, %v197
        %262 = vmax.xlane.f32.xlu0 %v261
        %v263 = vpop.xlane.xlu0 %262
        %v264 = vmax.f32 %v198, %v199
        %265 = vmax.xlane.f32.xlu0 %v264
        %v266 = vpop.xlane.xlu0 %265
        %v267 = vmax.f32 %v200, %v201
        %268 = vmax.xlane.f32.xlu0 %v267
        %v269 = vpop.xlane.xlu0 %268
        %v270 = vmax.f32 %v202, %v203
        %271 = vmax.xlane.f32.xlu0 %v270
        %v272 = vpop.xlane.xlu0 %271
        %v273 = vmax.f32 %v204, %v205
        %274 = vmax.xlane.f32.xlu0 %v273
        %v275 = vpop.xlane.xlu0 %274
        %v276 = vmax.f32 %v206, %v207
        %277 = vmax.xlane.f32.xlu0 %v276
        %v278 = vpop.xlane.xlu0 %277
        %v279 = vmax.f32 %v208, %v209
        %280 = vmax.xlane.f32.xlu0 %v279
        %v281 = vpop.xlane.xlu0 %280
        %vm282 = vcmask 23568
        %283 = vst.msk [vmem:[#allocation2] sm:$0xff] %vm282, %v260
        %284 = vst.msk [vmem:[#allocation2 + $0x8] sm:$0xff] %vm282, %v263
        %285 = vst.msk [vmem:[#allocation2 + $0x10] sm:$0xff] %vm282, %v266
        %286 = vst.msk [vmem:[#allocation2 + $0x18] sm:$0xff] %vm282, %v269
        %287 = vst.msk [vmem:[#allocation2 + $0x20] sm:$0xff] %vm282, %v272
        %288 = vst.msk [vmem:[#allocation2 + $0x28] sm:$0xff] %vm282, %v275
        %289 = vst.msk [vmem:[#allocation2 + $0x30] sm:$0xff] %vm282, %v278
        %290 = vst.msk [vmem:[#allocation2 + $0x38] sm:$0xff] %vm282, %v281
        %s291 = scalar_lea.vmem %s168, 128 [#allocation3]
        %v292 = vld [vmem:[%s291] sm:$0xff]
        %v293 = vld [vmem:[%s291 + $0x8] sm:$0xff]
        %v294 = vld [vmem:[%s291 + $0x10] sm:$0xff]
        %v295 = vld [vmem:[%s291 + $0x18] sm:$0xff]
        %v296 = vld [vmem:[%s291 + $0x20] sm:$0xff]
        %v297 = vld [vmem:[%s291 + $0x28] sm:$0xff]
        %v298 = vld [vmem:[%s291 + $0x30] sm:$0xff]
        %v299 = vld [vmem:[%s291 + $0x38] sm:$0xff]
        %v300 = vld [vmem:[%s291 + $0x40] sm:$0xff]
        %v301 = vld [vmem:[%s291 + $0x48] sm:$0xff]
        %v302 = vld [vmem:[%s291 + $0x50] sm:$0xff]
        %v303 = vld [vmem:[%s291 + $0x58] sm:$0xff]
        %v304 = vld [vmem:[%s291 + $0x60] sm:$0xff]
        %v305 = vld [vmem:[%s291 + $0x68] sm:$0xff]
        %v306 = vld [vmem:[%s291 + $0x70] sm:$0xff]
        %v307 = vld [vmem:[%s291 + $0x78] sm:$0xff]
        %v308 = vadd.f32 %v292, %v293
        %309 = vadd.xlane.f32.xlu0 %v308
        %v310 = vpop.xlane.xlu0 %309
        %v311 = vadd.f32 %v294, %v295
        %312 = vadd.xlane.f32.xlu0 %v311
        %v313 = vpop.xlane.xlu0 %312
        %v314 = vadd.f32 %v296, %v297
        %315 = vadd.xlane.f32.xlu0 %v314
        %v316 = vpop.xlane.xlu0 %315
        %v317 = vadd.f32 %v298, %v299
        %318 = vadd.xlane.f32.xlu0 %v317
        %v319 = vpop.xlane.xlu0 %318
        %v320 = vadd.f32 %v300, %v301
        %321 = vadd.xlane.f32.xlu0 %v320
        %v322 = vpop.xlane.xlu0 %321
        %v323 = vadd.f32 %v302, %v303
        %324 = vadd.xlane.f32.xlu0 %v323
        %v325 = vpop.xlane.xlu0 %324
        %v326 = vadd.f32 %v304, %v305
        %327 = vadd.xlane.f32.xlu0 %v326
        %v328 = vpop.xlane.xlu0 %327
        %v329 = vadd.f32 %v306, %v307
        %330 = vadd.xlane.f32.xlu0 %v329
        %v331 = vpop.xlane.xlu0 %330
        %v332 = vmul.f32 %v310, %v240
        %v333 = vmul.f32 %v313, %v240
        %v334 = vmul.f32 %v316, %v240
        %v335 = vmul.f32 %v319, %v240
        %v336 = vmul.f32 %v322, %v240
        %v337 = vmul.f32 %v325, %v240
        %v338 = vmul.f32 %v328, %v240
        %v339 = vmul.f32 %v331, %v240
        %vm340 = vcmask 15368
        %341 = vst.msk [vmem:[#allocation2] sm:$0xff] %vm340, %v332
        %342 = vst.msk [vmem:[#allocation2 + $0x8] sm:$0xff] %vm340, %v333
        %343 = vst.msk [vmem:[#allocation2 + $0x10] sm:$0xff] %vm340, %v334
        %344 = vst.msk [vmem:[#allocation2 + $0x18] sm:$0xff] %vm340, %v335
        %345 = vst.msk [vmem:[#allocation2 + $0x20] sm:$0xff] %vm340, %v336
        %346 = vst.msk [vmem:[#allocation2 + $0x28] sm:$0xff] %vm340, %v337
        %347 = vst.msk [vmem:[#allocation2 + $0x30] sm:$0xff] %vm340, %v338
        %348 = vst.msk [vmem:[#allocation2 + $0x38] sm:$0xff] %vm340, %v339
        %v349 = vmax.f32 %v292, %v293
        %350 = vmax.xlane.f32.xlu0 %v349
        %v351 = vpop.xlane.xlu0 %350
        %v352 = vmax.f32 %v294, %v295
        %353 = vmax.xlane.f32.xlu0 %v352
        %v354 = vpop.xlane.xlu0 %353
        %v355 = vmax.f32 %v296, %v297
        %356 = vmax.xlane.f32.xlu0 %v355
        %v357 = vpop.xlane.xlu0 %356
        %v358 = vmax.f32 %v298, %v299
        %359 = vmax.xlane.f32.xlu0 %v358
        %v360 = vpop.xlane.xlu0 %359
        %v361 = vmax.f32 %v300, %v301
        %362 = vmax.xlane.f32.xlu0 %v361
        %v363 = vpop.xlane.xlu0 %362
        %v364 = vmax.f32 %v302, %v303
        %365 = vmax.xlane.f32.xlu0 %v364
        %v366 = vpop.xlane.xlu0 %365
        %v367 = vmax.f32 %v304, %v305
        %368 = vmax.xlane.f32.xlu0 %v367
        %v369 = vpop.xlane.xlu0 %368
        %v370 = vmax.f32 %v306, %v307
        %371 = vmax.xlane.f32.xlu0 %v370
        %v372 = vpop.xlane.xlu0 %371
        %vm373 = vcmask 31768
        %374 = vst.msk [vmem:[#allocation2] sm:$0xff] %vm373, %v351
        %375 = vst.msk [vmem:[#allocation2 + $0x8] sm:$0xff] %vm373, %v354
        %376 = vst.msk [vmem:[#allocation2 + $0x10] sm:$0xff] %vm373, %v357
        %377 = vst.msk [vmem:[#allocation2 + $0x18] sm:$0xff] %vm373, %v360
        %378 = vst.msk [vmem:[#allocation2 + $0x20] sm:$0xff] %vm373, %v363
        %379 = vst.msk [vmem:[#allocation2 + $0x28] sm:$0xff] %vm373, %v366
        %380 = vst.msk [vmem:[#allocation2 + $0x30] sm:$0xff] %vm373, %v369
        %381 = vst.msk [vmem:[#allocation2 + $0x38] sm:$0xff] %vm373, %v372
        %v382 = vld [vmem:[%s1] sm:$0xf]
        %v383 = vld [vmem:[%s2] sm:$0xff]
        %v384 = vld [vmem:[%s2 + $0x8] sm:$0xff]
        %v385 = vld [vmem:[%s2 + $0x10] sm:$0xff]
        %v386 = vld [vmem:[%s2 + $0x18] sm:$0xff]
        %v387 = vld [vmem:[%s2 + $0x20] sm:$0xff]
        %v388 = vld [vmem:[%s2 + $0x28] sm:$0xff]
        %v389 = vld [vmem:[%s2 + $0x30] sm:$0xff]
        %v390 = vld [vmem:[%s2 + $0x38] sm:$0xff]
        %v391 = vld [vmem:[#allocation2] sm:$0xff]
        %v392 = vld [vmem:[#allocation2 + $0x8] sm:$0xff]
        %v393 = vld [vmem:[#allocation2 + $0x10] sm:$0xff]
        %v394 = vld [vmem:[#allocation2 + $0x18] sm:$0xff]
        %v395 = vld [vmem:[#allocation2 + $0x20] sm:$0xff]
        %v396 = vld [vmem:[#allocation2 + $0x28] sm:$0xff]
        %v397 = vld [vmem:[#allocation2 + $0x30] sm:$0xff]
        %v398 = vld [vmem:[#allocation2 + $0x38] sm:$0xff]
        %vm399 = vcmask 523264
        %v401 = vsel %vm399, %v382, 0
        %403 = vmatpush.msra.mxu0 0.0
        %404 = vmatpush.msra.mxu0 0.0
        %405 = vmatpush.msra.mxu0 0.0
        %406 = vmatpush.msra.mxu0 0.0
        %407 = vmatpush.msra.mxu0 0.0
        %408 = vmatpush.msra.mxu0 0.0
        %409 = vmatpush.msra.mxu0 0.0
        %410 = vmatpush.msra.mxu0 0.0
        %411 = vmatpush.msra.mxu0 %v398
        %412 = vmatpush.msra.mxu0 %v397
        %413 = vmatpush.msra.mxu0 %v396
        %414 = vmatpush.msra.mxu0 %v395
        %415 = vmatpush.msra.mxu0 %v394
        %416 = vmatpush.msra.mxu0 %v393
        %417 = vmatpush.msra.mxu0 %v392
        %418 = vmatpush.msra.mxu0 %v391
        %419 = vmatmul.f32.gmra.mxu0 %v401
        %v420 = vpop.f32.mrf.mxu0
        %v421 = vadd.f32 0.0, %v420
        %422 = vdwg.mxu0
        %v423 = vmax.f32 %v421, 0.0
        %vm424 = vcmask 31744
        %v426 = vsel %vm424, %v383, 0
        %v429 = vsel %vm424, %v384, 0
        %v432 = vsel %vm424, %v385, 0
        %v435 = vsel %vm424, %v386, 0
        %v438 = vsel %vm424, %v387, 0
        %v441 = vsel %vm424, %v388, 0
        %v444 = vsel %vm424, %v389, 0
        %v447 = vsel %vm424, %v390, 0
        %vm449 = vcmask 1043456
        %v451 = vsel %vm449, %v423, 0
        %453 = vmatpush.msra.mxu0 0.0
        %454 = vmatpush.msra.mxu0 0.0
        %455 = vmatpush.msra.mxu0 0.0
        %456 = vmatpush.msra.mxu0 0.0
        %457 = vmatpush.msra.mxu0 0.0
        %458 = vmatpush.msra.mxu0 0.0
        %459 = vmatpush.msra.mxu0 0.0
        %460 = vmatpush.msra.mxu0 0.0
        %461 = vmatpush.msra.mxu0 0.0
        %462 = vmatpush.msra.mxu0 0.0
        %463 = vmatpush.msra.mxu0 0.0
        %464 = vmatpush.msra.mxu0 0.0
        %465 = vmatpush.msra.mxu0 0.0
        %466 = vmatpush.msra.mxu0 0.0
        %467 = vmatpush.msra.mxu0 0.0
        %468 = vmatpush.msra.mxu0 %v451
        %469 = vmatmul.f32.gmra.mxu0 %v426
        %v470 = vpop.f32.mrf.mxu0
        %v471 = vadd.f32 0.0, %v470
        %472 = vmatmul.f32.gmra.mxu0 %v429
        %v473 = vpop.f32.mrf.mxu0
        %v474 = vadd.f32 0.0, %v473
        %475 = vmatmul.f32.gmra.mxu0 %v432
        %v476 = vpop.f32.mrf.mxu0
        %v477 = vadd.f32 0.0, %v476
        %478 = vmatmul.f32.gmra.mxu0 %v435
        %v479 = vpop.f32.mrf.mxu0
        %v480 = vadd.f32 0.0, %v479
        %481 = vmatmul.f32.gmra.mxu0 %v438
        %v482 = vpop.f32.mrf.mxu0
        %v483 = vadd.f32 0.0, %v482
        %484 = vmatmul.f32.gmra.mxu0 %v441
        %v485 = vpop.f32.mrf.mxu0
        %v486 = vadd.f32 0.0, %v485
        %487 = vmatmul.f32.gmra.mxu0 %v444
        %v488 = vpop.f32.mrf.mxu0
        %v489 = vadd.f32 0.0, %v488
        %490 = vmatmul.f32.gmra.mxu0 %v447
        %v491 = vpop.f32.mrf.mxu0
        %v492 = vadd.f32 0.0, %v491
        %493 = vdwg.mxu0
        %502 = vrot.lane.b32.xlu0 %v471, 126
        %v503 = vpop.permute.xlu0 %502
        %504 = vrot.lane.b32.xlu0 %v474, 126
        %v505 = vpop.permute.xlu0 %504
        %506 = vrot.lane.b32.xlu0 %v477, 126
        %v507 = vpop.permute.xlu0 %506
        %508 = vrot.lane.b32.xlu0 %v480, 126
        %v509 = vpop.permute.xlu0 %508
        %510 = vrot.lane.b32.xlu0 %v483, 126
        %v511 = vpop.permute.xlu0 %510
        %512 = vrot.lane.b32.xlu0 %v486, 126
        %v513 = vpop.permute.xlu0 %512
        %514 = vrot.lane.b32.xlu0 %v489, 126
        %v515 = vpop.permute.xlu0 %514
        %516 = vrot.lane.b32.xlu0 %v492, 126
        %v517 = vpop.permute.xlu0 %516
        %v526 = vadd.f32 %v471, %v503
        %v527 = vadd.f32 %v474, %v505
        %v528 = vadd.f32 %v477, %v507
        %v529 = vadd.f32 %v480, %v509
        %v530 = vadd.f32 %v483, %v511
        %v531 = vadd.f32 %v486, %v513
        %v532 = vadd.f32 %v489, %v515
        %v533 = vadd.f32 %v492, %v517
        %v534 = vxor.u32 %v526, 2147483648
        %v535 = vxor.u32 %v527, 2147483648
        %v536 = vxor.u32 %v528, 2147483648
        %v537 = vxor.u32 %v529, 2147483648
        %v538 = vxor.u32 %v530, 2147483648
        %v539 = vxor.u32 %v531, 2147483648
        %v540 = vxor.u32 %v532, 2147483648
        %v541 = vxor.u32 %v533, 2147483648
        %v542 = vmul.f32 %v534, 1.442695
        %v543 = vpow.pop %v542
        %v544 = vmul.f32 %v535, 1.442695
        %v545 = vpow.pop %v544
        %v546 = vmul.f32 %v536, 1.442695
        %v547 = vpow.pop %v546
        %v548 = vmul.f32 %v537, 1.442695
        %v549 = vpow.pop %v548
        %v550 = vmul.f32 %v538, 1.442695
        %v551 = vpow.pop %v550
        %v552 = vmul.f32 %v539, 1.442695
        %v553 = vpow.pop %v552
        %v554 = vmul.f32 %v540, 1.442695
        %v555 = vpow.pop %v554
        %v556 = vmul.f32 %v541, 1.442695
        %v557 = vpow.pop %v556
        %v558 = vadd.f32 %v543, 1.0
        %v559 = vadd.f32 %v545, 1.0
        %v560 = vadd.f32 %v547, 1.0
        %v561 = vadd.f32 %v549, 1.0
        %v562 = vadd.f32 %v551, 1.0
        %v563 = vadd.f32 %v553, 1.0
        %v564 = vadd.f32 %v555, 1.0
        %v565 = vadd.f32 %v557, 1.0
        %v566 = vrcp.pop %v558
        %v567 = vmul.f32 %v558, %v566
        %v568 = vsub.f32 1.0, %v567
        %v569 = vmul.f32 %v566, %v568
        %v570 = vadd.f32 %v566, %v569
        %vm571 = vweird.f32 %v558
        %vm572 = vweird.f32 %v566
        %vm573 = vmor %vm571, %vm572
        %v574 = vsel %vm573, %v566, %v570
        %v575 = vand.u32 2147483647, %v558
        %vm576 = vcmp.eq.f32.partialorder %v575, 8.507059e+37
        %v577 = vand.u32 %v558, 2147483648
        %v578 = vor.u32 1.1754944e-38, %v577
        %v579 = vsel %vm576, %v578, %v574
        %v580 = vmul.f32 1.0, %v579
        %v581 = vrcp.pop %v559
        %v582 = vmul.f32 %v559, %v581
        %v583 = vsub.f32 1.0, %v582
        %v584 = vmul.f32 %v581, %v583
        %v585 = vadd.f32 %v581, %v584
        %vm586 = vweird.f32 %v559
        %vm587 = vweird.f32 %v581
        %vm588 = vmor %vm586, %vm587
        %v589 = vsel %vm588, %v581, %v585
        %v590 = vand.u32 2147483647, %v559
        %vm591 = vcmp.eq.f32.partialorder %v590, 8.507059e+37
        %v592 = vand.u32 %v559, 2147483648
        %v593 = vor.u32 1.1754944e-38, %v592
        %v594 = vsel %vm591, %v593, %v589
        %v595 = vmul.f32 1.0, %v594
        %v596 = vrcp.pop %v560
        %v597 = vmul.f32 %v560, %v596
        %v598 = vsub.f32 1.0, %v597
        %v599 = vmul.f32 %v596, %v598
        %v600 = vadd.f32 %v596, %v599
        %vm601 = vweird.f32 %v560
        %vm602 = vweird.f32 %v596
        %vm603 = vmor %vm601, %vm602
        %v604 = vsel %vm603, %v596, %v600
        %v605 = vand.u32 2147483647, %v560
        %vm606 = vcmp.eq.f32.partialorder %v605, 8.507059e+37
        %v607 = vand.u32 %v560, 2147483648
        %v608 = vor.u32 1.1754944e-38, %v607
        %v609 = vsel %vm606, %v608, %v604
        %v610 = vmul.f32 1.0, %v609
        %v611 = vrcp.pop %v561
        %v612 = vmul.f32 %v561, %v611
        %v613 = vsub.f32 1.0, %v612
        %v614 = vmul.f32 %v611, %v613
        %v615 = vadd.f32 %v611, %v614
        %vm616 = vweird.f32 %v561
        %vm617 = vweird.f32 %v611
        %vm618 = vmor %vm616, %vm617
        %v619 = vsel %vm618, %v611, %v615
        %v620 = vand.u32 2147483647, %v561
        %vm621 = vcmp.eq.f32.partialorder %v620, 8.507059e+37
        %v622 = vand.u32 %v561, 2147483648
        %v623 = vor.u32 1.1754944e-38, %v622
        %v624 = vsel %vm621, %v623, %v619
        %v625 = vmul.f32 1.0, %v624
        %v626 = vrcp.pop %v562
        %v627 = vmul.f32 %v562, %v626
        %v628 = vsub.f32 1.0, %v627
        %v629 = vmul.f32 %v626, %v628
        %v630 = vadd.f32 %v626, %v629
        %vm631 = vweird.f32 %v562
        %vm632 = vweird.f32 %v626
        %vm633 = vmor %vm631, %vm632
        %v634 = vsel %vm633, %v626, %v630
        %v635 = vand.u32 2147483647, %v562
        %vm636 = vcmp.eq.f32.partialorder %v635, 8.507059e+37
        %v637 = vand.u32 %v562, 2147483648
        %v638 = vor.u32 1.1754944e-38, %v637
        %v639 = vsel %vm636, %v638, %v634
        %v640 = vmul.f32 1.0, %v639
        %v641 = vrcp.pop %v563
        %v642 = vmul.f32 %v563, %v641
        %v643 = vsub.f32 1.0, %v642
        %v644 = vmul.f32 %v641, %v643
        %v645 = vadd.f32 %v641, %v644
        %vm646 = vweird.f32 %v563
        %vm647 = vweird.f32 %v641
        %vm648 = vmor %vm646, %vm647
        %v649 = vsel %vm648, %v641, %v645
        %v650 = vand.u32 2147483647, %v563
        %vm651 = vcmp.eq.f32.partialorder %v650, 8.507059e+37
        %v652 = vand.u32 %v563, 2147483648
        %v653 = vor.u32 1.1754944e-38, %v652
        %v654 = vsel %vm651, %v653, %v649
        %v655 = vmul.f32 1.0, %v654
        %v656 = vrcp.pop %v564
        %v657 = vmul.f32 %v564, %v656
        %v658 = vsub.f32 1.0, %v657
        %v659 = vmul.f32 %v656, %v658
        %v660 = vadd.f32 %v656, %v659
        %vm661 = vweird.f32 %v564
        %vm662 = vweird.f32 %v656
        %vm663 = vmor %vm661, %vm662
        %v664 = vsel %vm663, %v656, %v660
        %v665 = vand.u32 2147483647, %v564
        %vm666 = vcmp.eq.f32.partialorder %v665, 8.507059e+37
        %v667 = vand.u32 %v564, 2147483648
        %v668 = vor.u32 1.1754944e-38, %v667
        %v669 = vsel %vm666, %v668, %v664
        %v670 = vmul.f32 1.0, %v669
        %v671 = vrcp.pop %v565
        %v672 = vmul.f32 %v565, %v671
        %v673 = vsub.f32 1.0, %v672
        %v674 = vmul.f32 %v671, %v673
        %v675 = vadd.f32 %v671, %v674
        %vm676 = vweird.f32 %v565
        %vm677 = vweird.f32 %v671
        %vm678 = vmor %vm676, %vm677
        %v679 = vsel %vm678, %v671, %v675
        %v680 = vand.u32 2147483647, %v565
        %vm681 = vcmp.eq.f32.partialorder %v680, 8.507059e+37
        %v682 = vand.u32 %v565, 2147483648
        %v683 = vor.u32 1.1754944e-38, %v682
        %v684 = vsel %vm681, %v683, %v679
        %v685 = vmul.f32 1.0, %v684
        %v686 = vld [vmem:[%s168] sm:$0xff]
        %v687 = vld [vmem:[%s168 + $0x8] sm:$0xff]
        %v688 = vld [vmem:[%s168 + $0x10] sm:$0xff]
        %v689 = vld [vmem:[%s168 + $0x18] sm:$0xff]
        %v690 = vld [vmem:[%s168 + $0x20] sm:$0xff]
        %v691 = vld [vmem:[%s168 + $0x28] sm:$0xff]
        %v692 = vld [vmem:[%s168 + $0x30] sm:$0xff]
        %v693 = vld [vmem:[%s168 + $0x38] sm:$0xff]
        %v694 = vld [vmem:[%s168 + $0x40] sm:$0xff]
        %v695 = vld [vmem:[%s168 + $0x48] sm:$0xff]
        %v696 = vld [vmem:[%s168 + $0x50] sm:$0xff]
        %v697 = vld [vmem:[%s168 + $0x58] sm:$0xff]
        %v698 = vld [vmem:[%s168 + $0x60] sm:$0xff]
        %v699 = vld [vmem:[%s168 + $0x68] sm:$0xff]
        %v700 = vld [vmem:[%s168 + $0x70] sm:$0xff]
        %v701 = vld [vmem:[%s168 + $0x78] sm:$0xff]
        %703 = vset.pattern.permute.xlu0 0
        %704 = vperm.xlu0 %703, %v580
        %v705 = vpop.permute.xlu0 %704
        %708 = vset.pattern.permute.xlu0 0
        %709 = vperm.xlu0 %708, %v595
        %v710 = vpop.permute.xlu0 %709
        %713 = vset.pattern.permute.xlu0 0
        %714 = vperm.xlu0 %713, %v610
        %v715 = vpop.permute.xlu0 %714
        %718 = vset.pattern.permute.xlu0 0
        %719 = vperm.xlu0 %718, %v625
        %v720 = vpop.permute.xlu0 %719
        %723 = vset.pattern.permute.xlu0 0
        %724 = vperm.xlu0 %723, %v640
        %v725 = vpop.permute.xlu0 %724
        %728 = vset.pattern.permute.xlu0 0
        %729 = vperm.xlu0 %728, %v655
        %v730 = vpop.permute.xlu0 %729
        %733 = vset.pattern.permute.xlu0 0
        %734 = vperm.xlu0 %733, %v670
        %v735 = vpop.permute.xlu0 %734
        %738 = vset.pattern.permute.xlu0 0
        %739 = vperm.xlu0 %738, %v685
        %v740 = vpop.permute.xlu0 %739
        %v742 = vmul.f32 %v686, %v705
        %v743 = vmul.f32 %v687, %v705
        %v744 = vmul.f32 %v688, %v710
        %v745 = vmul.f32 %v689, %v710
        %v746 = vmul.f32 %v690, %v715
        %v747 = vmul.f32 %v691, %v715
        %v748 = vmul.f32 %v692, %v720
        %v749 = vmul.f32 %v693, %v720
        %v750 = vmul.f32 %v694, %v725
        %v751 = vmul.f32 %v695, %v725
        %v752 = vmul.f32 %v696, %v730
        %v753 = vmul.f32 %v697, %v730
        %v754 = vmul.f32 %v698, %v735
        %v755 = vmul.f32 %v699, %v735
        %v756 = vmul.f32 %v700, %v740
        %v757 = vmul.f32 %v701, %v740
        %758 = vst [vmem:[%s191] sm:$0xff] %v742
        %759 = vst [vmem:[%s191 + $0x8] sm:$0xff] %v743
        %760 = vst [vmem:[%s191 + $0x10] sm:$0xff] %v744
        %761 = vst [vmem:[%s191 + $0x18] sm:$0xff] %v745
        %762 = vst [vmem:[%s191 + $0x20] sm:$0xff] %v746
        %763 = vst [vmem:[%s191 + $0x28] sm:$0xff] %v747
        %764 = vst [vmem:[%s191 + $0x30] sm:$0xff] %v748
        %765 = vst [vmem:[%s191 + $0x38] sm:$0xff] %v749
        %766 = vst [vmem:[%s191 + $0x40] sm:$0xff] %v750
        %767 = vst [vmem:[%s191 + $0x48] sm:$0xff] %v751
        %768 = vst [vmem:[%s191 + $0x50] sm:$0xff] %v752
        %769 = vst [vmem:[%s191 + $0x58] sm:$0xff] %v753
        %770 = vst [vmem:[%s191 + $0x60] sm:$0xff] %v754
        %771 = vst [vmem:[%s191 + $0x68] sm:$0xff] %v755
        %772 = vst [vmem:[%s191 + $0x70] sm:$0xff] %v756
        %773 = vst [vmem:[%s191 + $0x78] sm:$0xff] %v757
        %v774 = vld [vmem:[%s291] sm:$0xff]
        %v775 = vld [vmem:[%s291 + $0x8] sm:$0xff]
        %v776 = vld [vmem:[%s291 + $0x10] sm:$0xff]
        %v777 = vld [vmem:[%s291 + $0x18] sm:$0xff]
        %v778 = vld [vmem:[%s291 + $0x20] sm:$0xff]
        %v779 = vld [vmem:[%s291 + $0x28] sm:$0xff]
        %v780 = vld [vmem:[%s291 + $0x30] sm:$0xff]
        %v781 = vld [vmem:[%s291 + $0x38] sm:$0xff]
        %v782 = vld [vmem:[%s291 + $0x40] sm:$0xff]
        %v783 = vld [vmem:[%s291 + $0x48] sm:$0xff]
        %v784 = vld [vmem:[%s291 + $0x50] sm:$0xff]
        %v785 = vld [vmem:[%s291 + $0x58] sm:$0xff]
        %v786 = vld [vmem:[%s291 + $0x60] sm:$0xff]
        %v787 = vld [vmem:[%s291 + $0x68] sm:$0xff]
        %v788 = vld [vmem:[%s291 + $0x70] sm:$0xff]
        %v789 = vld [vmem:[%s291 + $0x78] sm:$0xff]
        %790 = vset.pattern.permute.xlu0 1
        %791 = vperm.xlu0 %790, %v580
        %v792 = vpop.permute.xlu0 %791
        %794 = vset.pattern.permute.xlu0 1
        %795 = vperm.xlu0 %794, %v595
        %v796 = vpop.permute.xlu0 %795
        %798 = vset.pattern.permute.xlu0 1
        %799 = vperm.xlu0 %798, %v610
        %v800 = vpop.permute.xlu0 %799
        %802 = vset.pattern.permute.xlu0 1
        %803 = vperm.xlu0 %802, %v625
        %v804 = vpop.permute.xlu0 %803
        %806 = vset.pattern.permute.xlu0 1
        %807 = vperm.xlu0 %806, %v640
        %v808 = vpop.permute.xlu0 %807
        %810 = vset.pattern.permute.xlu0 1
        %811 = vperm.xlu0 %810, %v655
        %v812 = vpop.permute.xlu0 %811
        %814 = vset.pattern.permute.xlu0 1
        %815 = vperm.xlu0 %814, %v670
        %v816 = vpop.permute.xlu0 %815
        %818 = vset.pattern.permute.xlu0 1
        %819 = vperm.xlu0 %818, %v685
        %v820 = vpop.permute.xlu0 %819
        %v822 = vmul.f32 %v774, %v792
        %v823 = vmul.f32 %v775, %v792
        %v824 = vmul.f32 %v776, %v796
        %v825 = vmul.f32 %v777, %v796
        %v826 = vmul.f32 %v778, %v800
        %v827 = vmul.f32 %v779, %v800
        %v828 = vmul.f32 %v780, %v804
        %v829 = vmul.f32 %v781, %v804
        %v830 = vmul.f32 %v782, %v808
        %v831 = vmul.f32 %v783, %v808
        %v832 = vmul.f32 %v784, %v812
        %v833 = vmul.f32 %v785, %v812
        %v834 = vmul.f32 %v786, %v816
        %v835 = vmul.f32 %v787, %v816
        %v836 = vmul.f32 %v788, %v820
        %v837 = vmul.f32 %v789, %v820
        %s838 = scalar_lea.vmem %s191, 128 [#allocation6]
        %839 = vst [vmem:[%s838] sm:$0xff] %v822
        %840 = vst [vmem:[%s838 + $0x8] sm:$0xff] %v823
        %841 = vst [vmem:[%s838 + $0x10] sm:$0xff] %v824
        %842 = vst [vmem:[%s838 + $0x18] sm:$0xff] %v825
        %843 = vst [vmem:[%s838 + $0x20] sm:$0xff] %v826
        %844 = vst [vmem:[%s838 + $0x28] sm:$0xff] %v827
        %845 = vst [vmem:[%s838 + $0x30] sm:$0xff] %v828
        %846 = vst [vmem:[%s838 + $0x38] sm:$0xff] %v829
        %847 = vst [vmem:[%s838 + $0x40] sm:$0xff] %v830
        %848 = vst [vmem:[%s838 + $0x48] sm:$0xff] %v831
        %849 = vst [vmem:[%s838 + $0x50] sm:$0xff] %v832
        %850 = vst [vmem:[%s838 + $0x58] sm:$0xff] %v833
        %851 = vst [vmem:[%s838 + $0x60] sm:$0xff] %v834
        %852 = vst [vmem:[%s838 + $0x68] sm:$0xff] %v835
        %853 = vst [vmem:[%s838 + $0x70] sm:$0xff] %v836
        %854 = vst [vmem:[%s838 + $0x78] sm:$0xff] %v837
        %s855 = sand.u32 %s96, 1
        %s856 = scalar_lea.sflag [#allocation5], %s855
        %s857 = sand.u32 %s96, 1
        %s858 = smul.addr %s857, 256
        %s859 = scalar_lea.vmem [#allocation6], %s858
        // Predicated region
        $region37: #{tpu_custom_call.1} parent=31 // pred_check
          %p860 = pneg %p106
        $region38: #{tpu_custom_call.1} parent=31 // pred_check_branch
          %862 = sbr.rel (%p860) target = $region40
        $region39: #{tpu_custom_call.1} parent=31 // pred_region
          %s863 = smul.u32 2, %s20
          %865 = vsyncadd %s856, 0
          %s866 = smul.addr %s863, 16
          %s867 = smul.addr %s866, 8
          %s868 = scalar_lea.hbm %s3, %s867
          %s869 = sshll.u32 %s859, 4
          %s870 = int_to_ptr.vmem [resolvable:$true] %s869
          %s871 = sshll.u32 %s868, 4
          %s872 = int_to_ptr.hbm [resolvable:$true] %s871
          %877 = dma.vmem_to_hbm [thread:$0]  %s870, 4096, %s872, %s856, 256, 256, 16
        $region40: #{tpu_custom_call.1} parent=31 // pred_fallthru
          _
      $region32: #{tpu_custom_call.1} parent=5 // pred_fallthru
        _
      %p878 = scmp.le.s32.totalorder 2, %s15
      // Predicated region
      $region41: #{tpu_custom_call.1} parent=5 // pred_check
        %p879 = pneg %p878
      $region42: #{tpu_custom_call.1} parent=5 // pred_check_branch
        %881 = sbr.rel (%p879) target = $region44
      $region43: #{tpu_custom_call.1} parent=5 // pred_region
        %s882 = ssub.s32 %s15, 2
        // Predicated region
        $region45: #{tpu_custom_call.1} parent=43 // pred_check
          %p883 = pneg %p112
        $region46: #{tpu_custom_call.1} parent=43 // pred_check_branch
          %885 = sbr.rel (%p883) target = $region48
        $region47: #{tpu_custom_call.1} parent=43 // pred_region
          %s886 = sand.u32 %s97, 1
          %s887 = scalar_lea.sflag [#allocation5], %s886
          %s888 = sand.u32 %s97, 1
          %s889 = smul.addr %s888, 256
          %s890 = scalar_lea.vmem [#allocation6], %s889
          %892 = dma.done %s887, 4096
        $region48: #{tpu_custom_call.1} parent=43 // pred_fallthru
          _
      $region44: #{tpu_custom_call.1} parent=5 // pred_fallthru
        _
    $region6: #{tpu_custom_call.1} parent=1 // loop_footer
      %s19 = sadd.s32 1, %s15
    $region7: #{tpu_custom_call.1} parent=1 // loop_footer_branch
      %14 = sbr.rel target = $region3
    $region8: #{tpu_custom_call.1} parent=1 // loop_exit
      _
    %893 = vsyncpa [#allocation4], 1
    %s894 = scalar_lea.sflag [#allocation4], 1
    %895 = vsyncpa %s894, 1
    %896 = vsyncpa [#allocation5], 1
    %s897 = scalar_lea.sflag [#allocation5], 1
    %898 = vsyncpa %s897, 1

</llo_original>
